<compile_context>
chip_gen: v7x
topology: tpu7x:2x2x1
jax: 0.10.0
libtpu: 0.0.40
codegen_flags: <defaults>
</compile_context>

<pallas_src>
import functools

import jax
import jax.numpy as jnp
from jax.experimental import pallas as pl
from jax.experimental.pallas import tpu as pltpu


# ----------------------------- polynomial activation (Horner form) -----------------------------
def _poly_activation(x, poly_type, gamma=None):
    """Polynomial activation. If `gamma` (traced f32 scalar) is given, it is folded into
    every coefficient, i.e. the result equals gamma * poly(x)."""
    dt = x.dtype
    if gamma is None:
        c = lambda v: v                                # weak python floats keep x's dtype
        s = lambda y: y
    else:
        c = lambda v: (gamma * v).astype(dt)           # scalar-unit work, hoisted off the VPU
        s = lambda y: y * gamma.astype(dt)
    x2 = x * x
    if poly_type == "cubic":
        return s(x2 * x)
    if poly_type == "tanh":
        # x - x^3/3 + 2 x^5/15
        return x * (c(1.0) + x2 * (c(-1.0 / 3.0) + x2 * c(2.0 / 15.0)))
    if poly_type == "sigmoid":
        # 1/2 + x/4 - x^3/48 + x^5/480
        return c(0.5) + x * (c(0.25) + x2 * (c(-1.0 / 48.0) + x2 * c(1.0 / 480.0)))
    return s(x2)                                       # "quadratic" / module default


# ----------------------------- kernels: norm_type 1 / 2 -----------------------------
def _polynorm_kernel(gamma_ref, beta_ref, *refs, poly_type, norm_type, nh, compute_dtype, has_mask):
    if has_mask:
        x_ref, m_ref, o_ref = refs
    else:
        (x_ref, o_ref), m_ref = refs, None
    h = pl.program_id(0) % nh
    gamma = gamma_ref[h]
    beta = beta_ref[h]
    x = x_ref[...].astype(compute_dtype)

    if norm_type == 1:
        a = _poly_activation(x, poly_type)                       # unscaled: needed for the row sum
        if m_ref is not None:
            a = jnp.where(m_ref[...] != 0, 0.0, a)
        denom = jnp.sum(a, axis=-1, keepdims=True, dtype=jnp.float32) + 1e-7
        scale = (gamma * pl.reciprocal(denom, approx=False)).astype(compute_dtype)
        out = a * scale + beta.astype(compute_dtype)
    else:                                                        # norm_type == 2 (identity)
        a = _poly_activation(x, poly_type, gamma)                # gamma folded into coefficients
        if m_ref is not None:
            a = jnp.where(m_ref[...] != 0, 0.0, a)               # masked positions end up == beta
        out = a + beta.astype(compute_dtype)
    o_ref[...] = out.astype(o_ref.dtype)


# ----------------------------- kernels: norm_type 0 (two-pass LayerNorm) -----------------------------
def _ln_stats_kernel(*refs, poly_type, tq, sq, has_mask):
    if has_mask:
        x_ref, m_ref, stats_ref = refs
    else:
        (x_ref, stats_ref), m_ref = refs, None
    b = pl.program_id(0)
    h = pl.program_id(1)
    q = pl.program_id(2)

    @pl.when(jnp.logical_and(h == 0, q == 0))
    def _():
        stats_ref[b, 0] = jnp.float32(0.0)
        stats_ref[b, 1] = jnp.float32(0.0)

    a = _poly_activation(x_ref[...].astype(jnp.float32), poly_type)
    if m_ref is not None:
        a = jnp.where(m_ref[...] != 0, 0.0, a)
    if sq % tq != 0:                                             # zero padded rows of the last tile
        rows = q * tq + jax.lax.broadcasted_iota(jnp.int32, a.shape, 0)
        a = jnp.where(rows < sq, a, 0.0)
    s1 = jnp.sum(jnp.sum(a, axis=-1, keepdims=True), axis=0, keepdims=True)
    s2 = jnp.sum(jnp.sum(a * a, axis=-1, keepdims=True), axis=0, keepdims=True)
    stats_ref[b, 0] += s1[0, 0]
    stats_ref[b, 1] += s2[0, 0]


def _ln_apply_kernel(gamma_ref, beta_ref, mean_ref, rstd_ref, *refs,
                     poly_type, compute_dtype, has_mask):
    if has_mask:
        x_ref, m_ref, o_ref = refs
    else:
        (x_ref, o_ref), m_ref = refs, None
    b = pl.program_id(0)
    h = pl.program_id(1)
    scale = gamma_ref[h] * rstd_ref[b]                           # f32 scalar work
    shift = beta_ref[h] - mean_ref[b] * scale
    a = _poly_activation(x_ref[...].astype(compute_dtype), poly_type)
    if m_ref is not None:
        a = jnp.where(m_ref[...] != 0, 0.0, a)
    out = a * scale.astype(compute_dtype) + shift.astype(compute_dtype)
    o_ref[...] = out.astype(o_ref.dtype)


# ----------------------------- tiling / budgeting helpers -----------------------------
def _device_budget():
    kind = ""
    try:
        kind = jax.devices()[0].device_kind.lower()
    except Exception:
        pass
    if "v7" in kind:
        # 64 MiB physical VMEM: halve the per-operand block budget, cap the scoped limit.
        return (1 << 20), (48 << 20), False
    is_v5e = ("v5 lite" in kind) or ("v5e" in kind) or ("v5lite" in kind)
    return (2 << 20), (96 << 20), is_v5e


def _choose_q_tile(sq, sk, itemsize, target_bytes):
    bytes_per_row = sk * max(4, itemsize)        # budget as f32 (covers live f32 intermediates)
    rows = max(1, target_bytes // bytes_per_row)
    if rows >= sq:
        return sq                                # full SQ block (always a legal block shape)
    return min(sq, max(8, (rows // 8) * 8))      # multiple of 8 for the sublane dim


def _vmem_limit(tq, sk, x_itemsize, mask_block_bytes, cap):
    blk = tq * sk * x_itemsize
    needed = 2 * (2 * blk + mask_block_bytes) + 8 * tq * sk * 4 + (2 << 20)
    return int(min(cap, max(needed, 16 << 20)))


def _prep_mask(attention_mask, shape):
    """Mask kept in its original (broadcastable) shape and a cheap dtype (bool -> int8)."""
    m = jnp.asarray(attention_mask)
    if m.ndim < 4:
        m = m.reshape((1,) * (4 - m.ndim) + m.shape)
    for ms, xs in zip(m.shape, shape):
        if ms != 1 and ms != xs:
            raise ValueError(f"attention_mask shape {m.shape} not broadcastable to {shape}")
    if m.dtype == jnp.bool_:
        m = m.astype(jnp.int8)
    return m


def _mask_spec(mshape, tq, sk, flat_nh=None):
    """BlockSpec for the mask in its original broadcast shape (size-1 dims -> block index 0)."""
    m0, m1, m2, m3 = mshape
    block = (None, None, tq if m2 != 1 else 1, sk if m3 != 1 else 1)
    if flat_nh is None:                                          # grid (b, h, q)
        def imap(b, h, q, *_):
            return (b if m0 != 1 else 0, h if m1 != 1 else 0, q if m2 != 1 else 0, 0)
    else:                                                        # grid (b*nh, q)
        nh = flat_nh
        def imap(i, q, *_):
            return ((i // nh) if m0 != 1 else 0,
                    (i % nh) if m1 != 1 else 0,
                    q if m2 != 1 else 0, 0)
    return pl.BlockSpec(block, imap)


# ----------------------------- forward wrapper -----------------------------
def polynorm_forward(inputs, seq_gamma, seq_beta, attention_mask=None,
                     poly_type="sigmoid", norm_type=2, seq_op_in_fp32=False):
    """inputs: [B, NH, SQ, SK]; seq_gamma/seq_beta: broadcastable to [1, NH, 1, 1]."""
    B, NH, SQ, SK = inputs.shape
    input_dtype = inputs.dtype
    itemsize = jnp.dtype(input_dtype).itemsize

    target_block_bytes, vmem_cap, is_v5e = _device_budget()
    tq = _choose_q_tile(SQ, SK, itemsize, target_block_bytes)
    qt = pl.cdiv(SQ, tq)

    # Compute dtype mirrors the reference: input dtype unless seq_op_in_fp32.
    # On v5e (no native bf16 VALU) sub-f32 inputs are promoted to f32 (more accurate, documented).
    if seq_op_in_fp32 or input_dtype == jnp.float32 or is_v5e:
        compute_dtype = jnp.float32
    else:
        compute_dtype = input_dtype

    gamma = jnp.broadcast_to(jnp.asarray(seq_gamma, jnp.float32).reshape(-1), (NH,))
    beta = jnp.broadcast_to(jnp.asarray(seq_beta, jnp.float32).reshape(-1), (NH,))

    mask = None
    mask_block_bytes = 0
    if attention_mask is not None:
        mask = _prep_mask(attention_mask, (B, NH, SQ, SK))
        mq = tq if mask.shape[2] != 1 else 1
        mk = SK if mask.shape[3] != 1 else 1
        mask_block_bytes = mq * mk * jnp.dtype(mask.dtype).itemsize
    has_mask = mask is not None

    vmem_limit = _vmem_limit(tq, SK, itemsize, mask_block_bytes, vmem_cap)

    if norm_type == 0:
        return _polynorm_layernorm(inputs, mask, gamma, beta, poly_type, compute_dtype,
                                   tq, qt, vmem_limit, has_mask)

    # ---- norm_type 1 / 2: one fused kernel over a flattened (B*NH, q-tile) parallel grid ----
    x3 = inputs.reshape(B * NH, SQ, SK)
    x_spec = pl.BlockSpec((None, tq, SK), lambda i, q, *_: (i, q, 0))
    in_specs = [x_spec]
    operands = [gamma, beta, x3]
    if has_mask:
        in_specs.append(_mask_spec(mask.shape, tq, SK, flat_nh=NH))
        operands.append(mask)

    kernel = functools.partial(_polynorm_kernel, poly_type=poly_type, norm_type=norm_type,
                               nh=NH, compute_dtype=compute_dtype, has_mask=has_mask)
    out = pl.pallas_call(
        kernel,
        out_shape=jax.ShapeDtypeStruct((B * NH, SQ, SK), input_dtype),
        grid_spec=pltpu.PrefetchScalarGridSpec(
            num_scalar_prefetch=2,
            grid=(B * NH, qt),
            in_specs=in_specs,
            out_specs=pl.BlockSpec((None, tq, SK), lambda i, q, *_: (i, q, 0)),
        ),
        compiler_params=pltpu.CompilerParams(
            dimension_semantics=("parallel", "parallel"),
            vmem_limit_bytes=vmem_limit,
        ),
    )(*operands)
    return out.reshape(B, NH, SQ, SK)


def _polynorm_layernorm(inputs, mask, gamma, beta, poly_type, compute_dtype,
                        tq, qt, vmem_limit, has_mask):
    """norm_type == 0: two-pass Pallas LayerNorm over (NH, SQ, SK) per batch element."""
    B, NH, SQ, SK = inputs.shape
    input_dtype = inputs.dtype
    x_spec = pl.BlockSpec((None, None, tq, SK), lambda b, h, q, *_: (b, h, q, 0))

    # ---- pass 1: per-batch sum / sum-of-squares of the masked activation (f32, SMEM accumulators) ----
    in_specs = [x_spec]
    operands = [inputs]
    if has_mask:
        in_specs.append(_mask_spec(mask.shape, tq, SK))
        operands.append(mask)
    stats = pl.pallas_call(
        functools.partial(_ln_stats_kernel, poly_type=poly_type, tq=tq, sq=SQ, has_mask=has_mask),
        out_shape=jax.ShapeDtypeStruct((B, 2), jnp.float32),
        grid_spec=pltpu.PrefetchScalarGridSpec(
            num_scalar_prefetch=0,
            grid=(B, NH, qt),
            in_specs=in_specs,
            out_specs=pl.BlockSpec(memory_space=pltpu.MemorySpace.SMEM),
        ),
        compiler_params=pltpu.CompilerParams(
            dimension_semantics=("arbitrary", "arbitrary", "arbitrary"),
            vmem_limit_bytes=vmem_limit,
        ),
    )(*operands)

    n = NH * SQ * SK
    mean = stats[:, 0] / n
    var = stats[:, 1] / n - mean * mean
    rstd = jax.lax.rsqrt(var + 1e-5)

    # ---- pass 2: fused activation + mask + normalize + affine ----
    in_specs = [x_spec]
    operands = [gamma, beta, mean.astype(jnp.float32), rstd.astype(jnp.float32), inputs]
    if has_mask:
        in_specs.append(_mask_spec(mask.shape, tq, SK))
        operands.append(mask)
    return pl.pallas_call(
        functools.partial(_ln_apply_kernel, poly_type=poly_type,
                          compute_dtype=compute_dtype, has_mask=has_mask),
        out_shape=jax.ShapeDtypeStruct((B, NH, SQ, SK), input_dtype),
        grid_spec=pltpu.PrefetchScalarGridSpec(
            num_scalar_prefetch=4,
            grid=(B, NH, qt),
            in_specs=in_specs,
            out_specs=pl.BlockSpec((None, None, tq, SK), lambda b, h, q, *_: (b, h, q, 0)),
        ),
        compiler_params=pltpu.CompilerParams(
            dimension_semantics=("parallel", "parallel", "parallel"),
            vmem_limit_bytes=vmem_limit,
        ),
    )(*operands)


# ----------------------------- pure-JAX reference (mirrors the PyTorch module) -----------------------------
def _reference(inputs, seq_gamma, seq_beta, attention_mask=None, poly_type="sigmoid",
               norm_type=2, seq_op_in_fp32=False):
    input_dtype = inputs.dtype
    x = inputs.astype(jnp.float32) if seq_op_in_fp32 else inputs
    if poly_type == "cubic":
        a = x ** 3
    elif poly_type == "tanh":
        a = x - x ** 3 / 3 + 2 * x ** 5 / 15
    elif poly_type == "sigmoid":
        a = 1 / 2 + x / 4 - x ** 3 / 48 + x ** 5 / 480
    else:  # "quadratic" / default
        a = x ** 2
    if attention_mask is not None:
        a = jnp.where(jnp.broadcast_to(attention_mask, a.shape) != 0, 0.0, a)
    if norm_type == 0:
        mu = jnp.mean(a, axis=(1, 2, 3), keepdims=True)
        var = jnp.mean((a - mu) ** 2, axis=(1, 2, 3), keepdims=True)
        a = (a - mu) / jnp.sqrt(var + 1e-5)
    elif norm_type == 1:
        a = a / (jnp.sum(a, axis=-1, keepdims=True) + 1e-7)
    g = jnp.asarray(seq_gamma, jnp.float32).reshape(1, -1, 1, 1)
    b = jnp.asarray(seq_beta, jnp.float32).reshape(1, -1, 1, 1)
    return (a * g + b).astype(input_dtype)


if __name__ == "__main__":
    B, NH, SQ, SK = 2, 4, 8, 128

    key = jax.random.PRNGKey(0)
    kx, kg, kb, km, kb2 = jax.random.split(key, 5)
    x = jax.random.normal(kx, (B, NH, SQ, SK), dtype=jnp.float32)
    seq_gamma = 1.0 + 0.1 * jax.random.normal(kg, (1, NH, 1, 1), dtype=jnp.float32)
    seq_beta = 0.1 * jax.random.normal(kb, (1, NH, 1, 1), dtype=jnp.float32)
    mask_full = (jax.random.uniform(km, (B, NH, SQ, SK)) < 0.2).astype(jnp.int32)
    mask_bcast = (jax.random.uniform(kb2, (B, 1, 1, SK)) < 0.2).astype(jnp.int32)

    # 1) module defaults: poly_type='sigmoid', norm_type=2, no mask
    out = jax.block_until_ready(polynorm_forward(x, seq_gamma, seq_beta))
    ref = _reference(x, seq_gamma, seq_beta)
    assert out.shape == x.shape and out.dtype == x.dtype
    assert jnp.allclose(out, ref, atol=1e-5, rtol=1e-5)

    # 2) full-shape int mask + norm_type=1 (row-sum normalization)
    out1 = jax.block_until_ready(
        polynorm_forward(x, seq_gamma, seq_beta, attention_mask=mask_full,
                         poly_type="sigmoid", norm_type=1))
    ref1 = _reference(x, seq_gamma, seq_beta, attention_mask=mask_full,
                      poly_type="sigmoid", norm_type=1)
    assert jnp.allclose(out1, ref1, atol=1e-5, rtol=1e-5)

    # 3) tanh polynomial, identity norm, no mask
    out2 = jax.block_until_ready(polynorm_forward(x, seq_gamma, seq_beta, poly_type="tanh"))
    ref2 = _reference(x, seq_gamma, seq_beta, poly_type="tanh")
    assert jnp.allclose(out2, ref2, atol=1e-5, rtol=1e-5)

    # 4) norm_type=0 (LayerNorm, two-pass Pallas) with a broadcast [B,1,1,SK] mask
    out3 = jax.block_until_ready(
        polynorm_forward(x, seq_gamma, seq_beta, attention_mask=mask_bcast,
                         poly_type="quadratic", norm_type=0))
    ref3 = _reference(x, seq_gamma, seq_beta, attention_mask=mask_bcast,
                      poly_type="quadratic", norm_type=0)
    assert jnp.allclose(out3, ref3, atol=1e-5, rtol=1e-5)

    print("KERNEL_OK")
</pallas_src>

<mosaic_0001>
module attributes {stable_mosaic.version = 11 : i64} {
  func.func @_polynorm_kernel(%arg0: i32, %arg1: i32, %arg2: memref<4xf32, #tpu.memory_space<smem>>, %arg3: memref<4xf32, #tpu.memory_space<smem>>, %arg4: memref<1x8x128xf32, #tpu.memory_space<vmem>>, %arg5: memref<1x8x128xf32, #tpu.memory_space<vmem>>) attributes {dimension_semantics = [#tpu.dimension_semantics<parallel>, #tpu.dimension_semantics<parallel>], iteration_bounds = array<i64: 8, 1>, scalar_prefetch = 2 : i64, scratch_operands = 0 : i64, tpu.core_type = #tpu.core_type<tc>, window_params = [{transform_indices = @transform_0, window_bounds = array<i64: 1, 8, 128>}, {transform_indices = @transform_1, window_bounds = array<i64: 1, 8, 128>}]} {
    %c4_i32 = arith.constant 4 : i32
    %c0_i32 = arith.constant 0 : i32
    %0 = arith.cmpi eq, %c4_i32, %c0_i32 : i32
    %c1_i32 = arith.constant 1 : i32
    %1 = arith.select %0, %c1_i32, %c4_i32 : i32
    %2 = arith.remsi %arg0, %1 : i32
    %c0_i32_0 = arith.constant 0 : i32
    %3 = arith.cmpi ne, %2, %c0_i32_0 : i32
    %c0_i32_1 = arith.constant 0 : i32
    %4 = arith.cmpi slt, %2, %c0_i32_1 : i32
    %c0_i32_2 = arith.constant 0 : i32
    %5 = arith.cmpi slt, %1, %c0_i32_2 : i32
    %6 = arith.xori %4, %5 : i1
    %7 = arith.andi %6, %3 : i1
    %8 = arith.addi %2, %1 : i32
    %9 = arith.select %7, %8, %2 : i32
    %10 = arith.index_cast %9 : i32 to index
    %11 = memref.load %arg2[%10] : memref<4xf32, #tpu.memory_space<smem>>
    %12 = arith.index_cast %9 : i32 to index
    %13 = memref.load %arg3[%12] : memref<4xf32, #tpu.memory_space<smem>>
    %c0 = arith.constant 0 : index
    %c0_3 = arith.constant 0 : index
    %c0_4 = arith.constant 0 : index
    %14 = vector.load %arg4[%c0, %c0_3, %c0_4] : memref<1x8x128xf32, #tpu.memory_space<vmem>>, vector<1x8x128xf32>
    %15 = vector.shape_cast %14 : vector<1x8x128xf32> to vector<8x128xf32>
    %16 = arith.mulf %15, %15 : vector<8x128xf32>
    %cst = arith.constant 5.000000e-01 : f32
    %17 = arith.mulf %11, %cst : f32
    %cst_5 = arith.constant 2.500000e-01 : f32
    %18 = arith.mulf %11, %cst_5 : f32
    %cst_6 = arith.constant -0.020833334 : f32
    %19 = arith.mulf %11, %cst_6 : f32
    %cst_7 = arith.constant 0.00208333344 : f32
    %20 = arith.mulf %11, %cst_7 : f32
    %21 = vector.broadcast %20 : f32 to vector<8x128xf32>
    %22 = arith.mulf %16, %21 : vector<8x128xf32>
    %23 = vector.broadcast %19 : f32 to vector<8x128xf32>
    %24 = arith.addf %23, %22 : vector<8x128xf32>
    %25 = arith.mulf %16, %24 : vector<8x128xf32>
    %26 = vector.broadcast %18 : f32 to vector<8x128xf32>
    %27 = arith.addf %26, %25 : vector<8x128xf32>
    %28 = arith.mulf %15, %27 : vector<8x128xf32>
    %29 = vector.broadcast %17 : f32 to vector<8x128xf32>
    %30 = arith.addf %29, %28 : vector<8x128xf32>
    %31 = vector.broadcast %13 : f32 to vector<8x128xf32>
    %32 = arith.addf %30, %31 : vector<8x128xf32>
    %c0_8 = arith.constant 0 : index
    %c0_9 = arith.constant 0 : index
    %c0_10 = arith.constant 0 : index
    %33 = vector.load %arg5[%c0_8, %c0_9, %c0_10] : memref<1x8x128xf32, #tpu.memory_space<vmem>>, vector<1x8x128xf32>
    %34 = vector.shape_cast %33 : vector<1x8x128xf32> to vector<8x128xf32>
    %35 = vector.shape_cast %32 : vector<8x128xf32> to vector<1x8x128xf32>
    tpu.vector_store %arg5[%c0_8, %c0_9, %c0_10], %35 {strides = array<i32>} : memref<1x8x128xf32, #tpu.memory_space<vmem>>, vector<1x8x128xf32>,
    return
  }
  func.func @transform_0(%arg0: i32, %arg1: i32, %arg2: memref<4xf32, #tpu.memory_space<smem>>, %arg3: memref<4xf32, #tpu.memory_space<smem>>) -> (i32, i32, i32) {
    %c0_i32 = arith.constant 0 : i32
    %c0_i32_0 = arith.constant 0 : i32
    return %arg0, %arg1, %c0_i32 : i32, i32, i32
  }
  func.func @transform_1(%arg0: i32, %arg1: i32, %arg2: memref<4xf32, #tpu.memory_space<smem>>, %arg3: memref<4xf32, #tpu.memory_space<smem>>) -> (i32, i32, i32) {
    %c0_i32 = arith.constant 0 : i32
    %c0_i32_0 = arith.constant 0 : i32
    return %arg0, %arg1, %c0_i32 : i32, i32, i32
  }
}

</mosaic_0001>

<llo_original>
// kernel: tpu_custom_call.1
$region0: #{tpu_custom_call.1}
  #allocation0 [shape = 'u32[]', space=smem, size = 0x4, offset = 0x4, fixed_abs, tag = 'smem constant byte address 0x4 - core index']
  #allocation1 [shape = 'u32[144,128]{1,0:T(1,128)}', space=vmem, size = 0x12000, scoped, tag = 'internal scratch']
  #allocation2 [shape = 's32[1]{0}', space=sflag, size = 0x4, scoped, tag = 'scoped memory for tpu_custom_call.1']
  #allocation3 [shape = 'u8[512]{0}', space=smem, size = 0x200, scoped, tag = 'prefetched SMEM operand 0']
  #allocation4 [shape = 'u8[512]{0}', space=smem, size = 0x200, scoped, tag = 'prefetched SMEM operand 1']
  %s0 = inlined_call_operand.hbm [shape: f32[4], index: 0, kind: input, shape index: {}]
  %s1 = inlined_call_operand.vmem [shape: f32[4], index: 1, kind: input, shape index: {}]
  %s2 = inlined_call_operand.hbm [shape: f32[8,8,128], index: 2, kind: input, shape index: {}]
  %s3 = inlined_call_operand.hbm [shape: f32[8,8,128], index: 3, kind: output, shape index: {}]
  %s4 = sld [smem:[#allocation0]]
  $region41: #{tpu_custom_call.1} parent=0
    _
  %s6 = ssub.s32 1, %s4
  %s7 = scalar_select 0, %s6, %s4
  %9 = dma.hbm_to_smem %s0, 16, [#allocation3], [#allocation2]
  %s10 = sshll.u32 %s1, 4
  %s11 = int_to_ptr.vmem [resolvable:$true] %s10
  %13 = dma.vmem_to_smem %s11, 16, [#allocation4], [#allocation2]
  %14 = dma.done [#allocation2], 32
  %15 = sfence
  $region1: #{tpu_custom_call.1} parent=0
    #allocation5 [shape = 'u8[8192]{0}', space=vmem, size = 0x2000, scoped, tag = 'input window, operand 2']
    #allocation6 [shape = 's32[2]{0}', space=sflag, size = 0x8, scoped, tag = 'scoped memory for tpu_custom_call.1']
    #allocation7 [shape = 's32[2]{0}', space=sflag, size = 0x8, scoped, tag = 'scoped memory for tpu_custom_call.1']
    #allocation8 [shape = 'u8[8192]{0}', space=vmem, size = 0x2000, scoped, tag = 'output window, operand 0']
    %16 = vsyncpa [#allocation6], 0
    %s17 = scalar_lea.sflag [#allocation6], 1
    %18 = vsyncpa %s17, 0
    %19 = vsyncpa [#allocation7], 0
    %s20 = scalar_lea.sflag [#allocation7], 1
    %21 = vsyncpa %s20, 0
    loop: start=0, step=1, limit=10
    $region2: #{tpu_custom_call.1} parent=1 // loop_pre_header
      _
    $region3: #{tpu_custom_call.1} parent=1 // loop_header
      %s23 = sphi 0, %s27
      %p24 = scmp.ge.s32.totalorder %s23, 10
      %s30 = sphi 0, %s42
      %s31 = sphi 0, %s38
      %s32 = sphi 0, %s30
      %s33 = sphi 0, %s31
      %s34 = sphi 0, %s32
      %s35 = sphi 0, %s33
      %s47 = sphi 0, %s49
      %s50 = sphi 0, %s47
      %s51 = sphi 0, %s50
      %s67 = sphi 0, %s51
      %s75 = sphi 0, %s77
      %s78 = sphi 0, %s75
      %s79 = sphi 0, %s78
      %s95 = sphi 0, %s79
    $region4: #{tpu_custom_call.1} parent=1 // loop_header_branch
      %26 = sbr.rel (%p24) target = $region8
    $region5: #{tpu_custom_call.1} parent=1 // loop_body
      %s28 = ssub.s32 %s23, 1
      %s29 = ssub.s32 %s23, 2
      %s36 = sadd.s32 1, %s31
      %p37 = scmp.ge.s32.totalorder %s36, 1
      %s38 = scalar_select %p37, 0, %s36
      %s39 = sadd.s32 1, %s30
      %s40 = scalar_select %p37, %s39, %s30
      %p41 = scmp.ge.s32.totalorder %s40, 8
      %s42 = scalar_select %p41, 0, %s40
      %s43 = ssub.s32 %s30, %s42
      %s44 = ssub.s32 %s31, %s38
      %s45 = sor.u32 %s43, %s44
      %p46 = scmp.eq.s32.totalorder %s45, 0
      %s48 = sadd.s32 %s47, 1
      %s49 = scalar_select %p46, %s47, %s48
      %p52 = pneg %p46
      %p53 = scmp.eq.s32.totalorder %s23, 7
      %p54 = por %p52, %p53
      %p55 = scmp.ne.s32.totalorder %s47, %s50
      %p56 = scmp.eq.s32.totalorder %s23, 0
      %p57 = por %p55, %p56
      %p58 = scmp.ne.s32.totalorder %s47, %s50
      %p59 = scmp.eq.s32.totalorder %s28, 7
      %p60 = por %p58, %p59
      %p61 = scmp.ne.s32.totalorder %s50, %s51
      %p62 = scmp.eq.s32.totalorder %s28, 0
      %p63 = por %p61, %p62
      %p64 = scmp.ne.s32.totalorder %s50, %s51
      %p65 = scmp.eq.s32.totalorder %s29, 7
      %p66 = por %p64, %p65
      %p68 = scmp.ne.s32.totalorder %s51, %s67
      %p69 = scmp.eq.s32.totalorder %s29, 0
      %p70 = por %p68, %p69
      %s71 = ssub.s32 %s30, %s42
      %s72 = ssub.s32 %s31, %s38
      %s73 = sor.u32 %s71, %s72
      %p74 = scmp.eq.s32.totalorder %s73, 0
      %s76 = sadd.s32 %s75, 1
      %s77 = scalar_select %p74, %s75, %s76
      %p80 = pneg %p74
      %p81 = scmp.eq.s32.totalorder %s23, 7
      %p82 = por %p80, %p81
      %p83 = scmp.ne.s32.totalorder %s75, %s78
      %p84 = scmp.eq.s32.totalorder %s23, 0
      %p85 = por %p83, %p84
      %p86 = scmp.ne.s32.totalorder %s75, %s78
      %p87 = scmp.eq.s32.totalorder %s28, 7
      %p88 = por %p86, %p87
      %p89 = scmp.ne.s32.totalorder %s78, %s79
      %p90 = scmp.eq.s32.totalorder %s28, 0
      %p91 = por %p89, %p90
      %p92 = scmp.ne.s32.totalorder %s78, %s79
      %p93 = scmp.eq.s32.totalorder %s29, 7
      %p94 = por %p92, %p93
      %p96 = scmp.ne.s32.totalorder %s79, %s95
      %p97 = scmp.eq.s32.totalorder %s29, 0
      %p98 = por %p96, %p97
      %p99 = scmp.le.s32.totalorder 1, %s23
      %p100 = scmp.lt.s32.totalorder %s23, 9
      %p101 = pnand %p99, %p100
      %p102 = pneg %p101
      // Predicated region
      $region9: #{tpu_custom_call.1} parent=5 // pred_check
        _
      $region10: #{tpu_custom_call.1} parent=5 // pred_check_branch
        %104 = sbr.rel (%p101) target = $region12
      $region11: #{tpu_custom_call.1} parent=5 // pred_region
        %s105 = ssub.s32 %s23, 1
      $region12: #{tpu_custom_call.1} parent=5 // pred_fallthru
        _
      %p106 = scmp.lt.s32.totalorder %s23, 8
      // Predicated region
      $region13: #{tpu_custom_call.1} parent=5 // pred_check
        %p107 = pneg %p106
      $region14: #{tpu_custom_call.1} parent=5 // pred_check_branch
        %109 = sbr.rel (%p107) target = $region16
      $region15: #{tpu_custom_call.1} parent=5 // pred_region
        // Predicated region
        $region17: #{tpu_custom_call.1} parent=15 // pred_check
          %p110 = pneg %p57
        $region18: #{tpu_custom_call.1} parent=15 // pred_check_branch
          %112 = sbr.rel (%p110) target = $region20
        $region19: #{tpu_custom_call.1} parent=15 // pred_region
          %s113 = sand.u32 %s47, 1
          %s114 = scalar_lea.sflag [#allocation6], %s113
          %s115 = sand.u32 %s47, 1
          %s116 = smul.addr %s115, 8
          %s117 = scalar_lea.vmem [#allocation5], %s116
          %s119 = ssub.s32 128, 128
          %120 = vsyncadd %s114, %s119
          %s121 = sadd.s32 %s31, %s30
          %s122 = smul.addr %s121, 128
          %s123 = scalar_lea.hbm %s2, %s122
          %s125 = sshll.u32 %s117, 4
          %s126 = int_to_ptr.vmem [resolvable:$true] %s125
          %128 = dma.hbm_to_vmem [thread:$0]  %s123, 128, %s126, %s114
        $region20: #{tpu_custom_call.1} parent=15 // pred_fallthru
          _
      $region16: #{tpu_custom_call.1} parent=5 // pred_fallthru
        _
      %p129 = scmp.le.s32.totalorder 1, %s23
      %p130 = scmp.lt.s32.totalorder %s23, 9
      %p131 = pnand %p129, %p130
      %p132 = pneg %p131
      // Predicated region
      $region21: #{tpu_custom_call.1} parent=5 // pred_check
        _
      $region22: #{tpu_custom_call.1} parent=5 // pred_check_branch
        %134 = sbr.rel (%p131) target = $region24
      $region23: #{tpu_custom_call.1} parent=5 // pred_region
        %s135 = ssub.s32 %s23, 1
        %s136 = sand.u32 %s50, 1
        %s137 = scalar_lea.sflag [#allocation6], %s136
        %s138 = sand.u32 %s50, 1
        %s139 = smul.addr %s138, 8
        %s140 = scalar_lea.vmem [#allocation5], %s139
        // Predicated region
        $region25: #{tpu_custom_call.1} parent=23 // pred_check
          %p141 = pneg %p63
        $region26: #{tpu_custom_call.1} parent=23 // pred_check_branch
          %143 = sbr.rel (%p141) target = $region28
        $region27: #{tpu_custom_call.1} parent=23 // pred_region
          %144 = dma.done %s137, 128
        $region28: #{tpu_custom_call.1} parent=23 // pred_fallthru
          _
        %s145 = sand.u32 %s50, 1
        %s146 = scalar_lea.sflag [#allocation6], %s145
        %s147 = sand.u32 %s50, 1
        %s148 = smul.addr %s147, 8
        %s149 = scalar_lea.vmem [#allocation5], %s148
        %p150 = pneg %p63
        %p151 = pneg %p60
        %p152 = pneg %p91
        %p153 = pneg %p88
        %s154 = sand.u32 %s78, 1
        %s155 = scalar_lea.sflag [#allocation7], %s154
        %s156 = sand.u32 %s78, 1
        %s157 = smul.addr %s156, 8
        %s158 = scalar_lea.vmem [#allocation8], %s157
        %p159 = scmp.lt.s32.totalorder %s32, 0
        %s160 = ssub.s32 0, %s32
        %s161 = scalar_select %p159, %s160, %s32
        %s162 = sand.u32 %s161, 3
        %s163 = ssub.s32 0, %s162
        %s164 = scalar_select %p159, %s163, %s162
        %p165 = scmp.ne.s32.totalorder %s164, 0
        %p166 = scmp.lt.s32.totalorder %s164, 0
        %p167 = pnand %p166, %p165
        %p168 = pneg %p167
        %s169 = sadd.s32 %s164, 4
        %s170 = scalar_select %p168, %s169, %s164
        %s171 = sld [smem:[#allocation3 + %s170]]
        %s172 = sld [smem:[#allocation4 + %s170]]
        %v173 = vld [vmem:[%s140] sm:$0xff]
        %v174 = vmul.f32 %v173, %v173
        %s175 = smul.f32 %s171, 0.5
        %s176 = smul.f32 %s171, 0.25
        %s177 = smul.f32 %s171, -0.020833334
        %s178 = smul.f32 %s171, 0.0020833334
        %v179 = vstv %s178
        %v180 = vmul.f32 %v174, %v179
        %v181 = vstv %s177
        %v182 = vadd.f32 %v181, %v180
        %v183 = vmul.f32 %v174, %v182
        %v184 = vstv %s176
        %v185 = vadd.f32 %v184, %v183
        %v186 = vmul.f32 %v173, %v185
        %v187 = vstv %s175
        %v188 = vadd.f32 %v187, %v186
        %v189 = vstv %s172
        %v190 = vadd.f32 %v188, %v189
        %191 = vst [vmem:[%s158] sm:$0xff] %v190
        %s192 = sand.u32 %s78, 1
        %s193 = scalar_lea.sflag [#allocation7], %s192
        %s194 = sand.u32 %s78, 1
        %s195 = smul.addr %s194, 8
        %s196 = scalar_lea.vmem [#allocation8], %s195
        // Predicated region
        $region29: #{tpu_custom_call.1} parent=23 // pred_check
          %p197 = pneg %p88
        $region30: #{tpu_custom_call.1} parent=23 // pred_check_branch
          %199 = sbr.rel (%p197) target = $region32
        $region31: #{tpu_custom_call.1} parent=23 // pred_region
          %s201 = ssub.s32 128, 128
          %202 = vsyncadd %s193, %s201
          %s203 = sadd.s32 %s33, %s32
          %s204 = smul.addr %s203, 128
          %s205 = scalar_lea.hbm %s3, %s204
          %s207 = sshll.u32 %s196, 4
          %s208 = int_to_ptr.vmem [resolvable:$true] %s207
          %210 = dma.vmem_to_hbm [thread:$0]  %s208, 128, %s205, %s193
        $region32: #{tpu_custom_call.1} parent=23 // pred_fallthru
          _
      $region24: #{tpu_custom_call.1} parent=5 // pred_fallthru
        _
      %p211 = scmp.le.s32.totalorder 2, %s23
      // Predicated region
      $region33: #{tpu_custom_call.1} parent=5 // pred_check
        %p212 = pneg %p211
      $region34: #{tpu_custom_call.1} parent=5 // pred_check_branch
        %214 = sbr.rel (%p212) target = $region36
      $region35: #{tpu_custom_call.1} parent=5 // pred_region
        %s215 = ssub.s32 %s23, 2
        // Predicated region
        $region37: #{tpu_custom_call.1} parent=35 // pred_check
          %p216 = pneg %p94
        $region38: #{tpu_custom_call.1} parent=35 // pred_check_branch
          %218 = sbr.rel (%p216) target = $region40
        $region39: #{tpu_custom_call.1} parent=35 // pred_region
          %s219 = sand.u32 %s79, 1
          %s220 = scalar_lea.sflag [#allocation7], %s219
          %s221 = sand.u32 %s79, 1
          %s222 = smul.addr %s221, 8
          %s223 = scalar_lea.vmem [#allocation8], %s222
          %224 = dma.done %s220, 128
        $region40: #{tpu_custom_call.1} parent=35 // pred_fallthru
          _
      $region36: #{tpu_custom_call.1} parent=5 // pred_fallthru
        _
    $region6: #{tpu_custom_call.1} parent=1 // loop_footer
      %s27 = sadd.s32 1, %s23
    $region7: #{tpu_custom_call.1} parent=1 // loop_footer_branch
      %22 = sbr.rel target = $region3
    $region8: #{tpu_custom_call.1} parent=1 // loop_exit
      _
    %225 = vsyncpa [#allocation6], 1
    %s226 = scalar_lea.sflag [#allocation6], 1
    %227 = vsyncpa %s226, 1
    %228 = vsyncpa [#allocation7], 1
    %s229 = scalar_lea.sflag [#allocation7], 1
    %230 = vsyncpa %s229, 1

</llo_original>
